<compile_context>
chip_gen: v6e
topology: v6e:2x2x1
jax: 0.10.0
libtpu: 0.0.40
codegen_flags: <defaults>
</compile_context>

<pallas_src>
import math
from functools import partial

import jax
import jax.numpy as jnp
from jax.experimental import pallas as pl
from jax.experimental.pallas import tpu as pltpu

IN_DIM = 3       # state dimension (nn.Linear(3, 128))
HIDDEN = 128
OUT_DIM = 1      # action dimension (mean / std heads)
HEAD_PAD = 8     # mean/std head rows padded 2 -> 8 sublanes (resident weight only)
TB_MAX = 2048    # max batch tile on the lane axis (multiple of 128)

_HALF_LOG_2PI = 0.5 * math.log(2.0 * math.pi)


def _round_up(x, m):
    return ((x + m - 1) // m) * m


def _tensorcores_per_chip():
    """Best-effort detection of multi-TensorCore chips (v7x / v4 / v5p)."""
    try:
        kind = jax.devices()[0].device_kind.lower()
    except Exception:
        return 1
    if "lite" in kind or "v5e" in kind or "v6" in kind:
        return 1
    if "v7" in kind or "v4" in kind or "v5p" in kind:
        return 2
    return 1


_TC_PER_CHIP = _tensorcores_per_chip()


# ---------------------------------------------------------------------------
# Kernels
# ---------------------------------------------------------------------------

def _mean_std(stateT, w1T, b1, wh, bh):
    # First layer (3 -> 128) as three broadcast FMAs on the VPU: K=3 is far too
    # small for the MXU to matter, and this keeps the streamed state unpadded at
    # 3 sublanes (the dominant HBM stream).
    hT = (w1T[:, 0:1] * stateT[0:1, :]
          + w1T[:, 1:2] * stateT[1:2, :]
          + w1T[:, 2:3] * stateT[2:3, :]
          + b1)                                                  # (HIDDEN, TB)
    hT = jnp.maximum(hT, 0.0)
    # Both heads fused into one MXU matmul: row 0 = mean, row 1 = std pre-act.
    heads = jnp.dot(wh, hT, preferred_element_type=jnp.float32) + bh   # (HEAD_PAD, TB)
    mean = heads[0:1, :]
    std = jax.nn.softplus(heads[1:2, :])
    return mean, std


def policy_kernel_stoch(stateT_ref, epsT_ref, w1T_ref, b1_ref, wh_ref, bh_ref, out_ref):
    mean, std = _mean_std(stateT_ref[...], w1T_ref[...], b1_ref[...],
                          wh_ref[...], bh_ref[...])
    eps = epsT_ref[...]
    # rsample: action = mean + std * eps.  (action - mean)/std == eps exactly,
    # so Normal.log_prob reduces to -0.5*eps^2 - log(std) - 0.5*log(2*pi).
    action = mean + std * eps
    log_prob = -0.5 * eps * eps - jnp.log(std) - _HALF_LOG_2PI
    real_action = jnp.tanh(action)
    # Same clamped tanh correction as the PyTorch reference (log(1 - tanh^2 + 1e-7)).
    real_log_prob = log_prob - jnp.log(1.0 - real_action * real_action + 1e-7)
    # Packed lane-dense output: row 0 = action, row 1 = log_prob (two direct stores,
    # no cross-sublane concatenate).
    out_ref[0:1, :] = real_action
    out_ref[1:2, :] = real_log_prob


def policy_kernel_det(stateT_ref, w1T_ref, b1_ref, wh_ref, bh_ref, out_ref):
    mean, std = _mean_std(stateT_ref[...], w1T_ref[...], b1_ref[...],
                          wh_ref[...], bh_ref[...])
    # deterministic: action == mean, so the squared term in log_prob is exactly 0.
    log_prob = -jnp.log(std) - _HALF_LOG_2PI
    real_action = jnp.tanh(mean)
    real_log_prob = log_prob - jnp.log(1.0 - real_action * real_action + 1e-7)
    out_ref[0:1, :] = real_action
    out_ref[1:2, :] = real_log_prob


# ---------------------------------------------------------------------------
# Parameters
# ---------------------------------------------------------------------------

def init_params(key):
    """Deterministic init matching the nn.Linear shapes (uniform +/- 1/sqrt(fan_in))."""
    k1, k2, k3, k4, k5, k6 = jax.random.split(key, 6)
    b_in = 1.0 / math.sqrt(IN_DIM)
    b_h = 1.0 / math.sqrt(HIDDEN)
    return {
        "w1": jax.random.uniform(k1, (IN_DIM, HIDDEN), jnp.float32, -b_in, b_in),
        "b1": jax.random.uniform(k2, (HIDDEN,), jnp.float32, -b_in, b_in),
        "wm": jax.random.uniform(k3, (HIDDEN, OUT_DIM), jnp.float32, -b_h, b_h),
        "bm": jax.random.uniform(k4, (OUT_DIM,), jnp.float32, -b_h, b_h),
        "ws": jax.random.uniform(k5, (HIDDEN, OUT_DIM), jnp.float32, -b_h, b_h),
        "bs": jax.random.uniform(k6, (OUT_DIM,), jnp.float32, -b_h, b_h),
    }


def prepare_params(params):
    """One-time transposition / head fusion of the weights into the kernel layout."""
    w1T = params["w1"].T.astype(jnp.float32)                    # (HIDDEN, IN_DIM) = (128, 3)
    b1 = params["b1"].astype(jnp.float32).reshape(HIDDEN, 1)    # (128, 1)
    wh = (jnp.zeros((HEAD_PAD, HIDDEN), jnp.float32)            # row 0 = mean, row 1 = std
          .at[0, :].set(params["wm"][:, 0])
          .at[1, :].set(params["ws"][:, 0]))
    bh = (jnp.zeros((HEAD_PAD, 1), jnp.float32)
          .at[0, 0].set(params["bm"][0])
          .at[1, 0].set(params["bs"][0]))
    return {"w1T": w1T, "b1": b1, "wh": wh, "bh": bh}


# ---------------------------------------------------------------------------
# Forward wrapper
# ---------------------------------------------------------------------------

def _tile_config(B):
    """Batch tile (lane axis, multiple of 128) and padded batch size."""
    B128 = _round_up(max(B, 1), 128)
    tb = min(B128, TB_MAX)
    # Multi-TensorCore chips: make sure the "parallel" grid axis has >= 2 steps
    # so both cores get work.  Single-TC chips keep maximizing the tile instead.
    if _TC_PER_CHIP >= 2 and B128 >= 256:
        tb = min(tb, _round_up(B128 // 2, 128))
    B_pad = _round_up(B, tb)
    return tb, B_pad


@partial(jax.jit, static_argnames=("deterministic",))
def policy_forward(state, prepped, eps=None, deterministic=False):
    """state: (B, 3) f32. eps: (B, 1) f32 standard-normal noise (only used when
    not deterministic). Returns (real_action, real_log_prob), each (B, 1) f32."""
    B = state.shape[0]
    TB, B_pad = _tile_config(B)
    grid = (B_pad // TB,)

    # Batch-on-lanes relayout.  With allow_input_fusion the transpose/pad producers
    # are fused into the pallas_call operand reads instead of being materialized.
    stateT = jnp.pad(state.astype(jnp.float32).T, ((0, 0), (0, B_pad - B)))  # (3, B_pad)

    w_specs = [
        pl.BlockSpec((HIDDEN, IN_DIM), lambda i: (0, 0)),    # w1^T (resident)
        pl.BlockSpec((HIDDEN, 1), lambda i: (0, 0)),         # b1
        pl.BlockSpec((HEAD_PAD, HIDDEN), lambda i: (0, 0)),  # fused head weights
        pl.BlockSpec((HEAD_PAD, 1), lambda i: (0, 0)),       # fused head biases
    ]
    weights = (prepped["w1T"], prepped["b1"], prepped["wh"], prepped["bh"])

    if deterministic:
        kernel = policy_kernel_det
        in_specs = [pl.BlockSpec((IN_DIM, TB), lambda i: (0, i))] + w_specs
        operands = (stateT,) + weights
        fuse = [True] + [False] * len(weights)
    else:
        epsT = jnp.pad(eps.astype(jnp.float32).reshape(1, B), ((0, 0), (0, B_pad - B)))
        kernel = policy_kernel_stoch
        in_specs = [pl.BlockSpec((IN_DIM, TB), lambda i: (0, i)),
                    pl.BlockSpec((1, TB), lambda i: (0, i))] + w_specs
        operands = (stateT, epsT) + weights
        fuse = [True, True] + [False] * len(weights)

    # Per-step VMEM footprint (~1.5 MB at TB=2048, incl. double-buffering) fits the
    # default scoped-VMEM limit on all of v5e/v6e/v7x, so no vmem_limit_bytes needed.
    out = pl.pallas_call(
        kernel,
        grid=grid,
        in_specs=in_specs,
        out_specs=pl.BlockSpec((2, TB), lambda i: (0, i)),
        out_shape=jax.ShapeDtypeStruct((2, B_pad), jnp.float32),
        compiler_params=pltpu.CompilerParams(
            dimension_semantics=("parallel",),
            allow_input_fusion=fuse),
    )(*operands)

    real_action = out[0, :B].reshape(B, OUT_DIM)
    real_log_prob = out[1, :B].reshape(B, OUT_DIM)
    return real_action, real_log_prob


# ---------------------------------------------------------------------------
# Pure-JAX reference (matches the PyTorch forward, including the +1e-7 clamp)
# ---------------------------------------------------------------------------

def _ref_forward(state, params, eps, deterministic):
    h = jax.nn.relu(state @ params["w1"] + params["b1"])
    mean = h @ params["wm"] + params["bm"]
    std = jax.nn.softplus(h @ params["ws"] + params["bs"])
    action = mean if deterministic else mean + std * eps
    log_prob = (-0.5 * ((action - mean) / std) ** 2
                - jnp.log(std) - _HALF_LOG_2PI)
    real_action = jnp.tanh(action)
    real_log_prob = log_prob - jnp.log(1.0 - real_action * real_action + 1e-7)
    return real_action, real_log_prob


# TODO(synk): train_step / Adam optimizer & backward pass are a training loop, not a
# forward-pass kernel, and are intentionally not implemented here.

if __name__ == "__main__":
    key = jax.random.PRNGKey(0)
    pkey, skey, ekey, skey2, ekey2 = jax.random.split(key, 5)

    params = init_params(pkey)
    prepped = prepare_params(params)

    # Small batch (single tile, deterministic + stochastic paths).
    B = 8
    state = jax.random.normal(skey, (B, IN_DIM), jnp.float32)
    eps = jax.random.normal(ekey, (B, OUT_DIM), jnp.float32)

    action, log_prob = policy_forward(state, prepped, eps, deterministic=False)
    action_det, log_prob_det = policy_forward(state, prepped, None, deterministic=True)

    # Non-multiple-of-128 batch (exercises padding; 2 grid steps on multi-TC chips).
    B2 = 300
    state2 = jax.random.normal(skey2, (B2, IN_DIM), jnp.float32)
    eps2 = jax.random.normal(ekey2, (B2, OUT_DIM), jnp.float32)
    action2, log_prob2 = policy_forward(state2, prepped, eps2, deterministic=False)

    jax.block_until_ready((action, log_prob, action_det, log_prob_det, action2, log_prob2))

    ra_ref, rlp_ref = _ref_forward(state, params, eps, False)
    ra_dref, rlp_dref = _ref_forward(state, params, None, True)
    ra2_ref, rlp2_ref = _ref_forward(state2, params, eps2, False)

    assert action.shape == (B, OUT_DIM) and log_prob.shape == (B, OUT_DIM)
    assert jnp.all(jnp.isfinite(action)) and jnp.all(jnp.isfinite(log_prob))
    assert jnp.allclose(action, ra_ref, atol=1e-5, rtol=1e-5)
    assert jnp.allclose(log_prob, rlp_ref, atol=1e-4, rtol=1e-4)
    assert jnp.allclose(action_det, ra_dref, atol=1e-5, rtol=1e-5)
    assert jnp.allclose(log_prob_det, rlp_dref, atol=1e-4, rtol=1e-4)
    assert jnp.allclose(action2, ra2_ref, atol=1e-5, rtol=1e-5)
    assert jnp.allclose(log_prob2, rlp2_ref, atol=1e-4, rtol=1e-4)

    print("KERNEL_OK")
</pallas_src>

<mosaic_0001>
module attributes {stable_mosaic.version = 11 : i64} {
  func.func @policy_kernel_stoch(%arg0: i32, %arg1: memref<3x128xf32, #tpu.memory_space<vmem>>, %arg2: memref<1x128xf32, #tpu.memory_space<vmem>>, %arg3: memref<128x3xf32, #tpu.memory_space<vmem>>, %arg4: memref<128x1xf32, #tpu.memory_space<vmem>>, %arg5: memref<8x128xf32, #tpu.memory_space<vmem>>, %arg6: memref<8x1xf32, #tpu.memory_space<vmem>>, %arg7: memref<2x128xf32, #tpu.memory_space<vmem>>) attributes {dimension_semantics = [#tpu.dimension_semantics<parallel>], iteration_bounds = array<i64: 1>, scalar_prefetch = 0 : i64, scratch_operands = 0 : i64, tpu.core_type = #tpu.core_type<tc>, window_params = [{transform_indices = @transform_0, window_bounds = array<i64: 3, 128>}, {transform_indices = @transform_1, window_bounds = array<i64: 1, 128>}, {pipeline_mode = #tpu.pipeline_mode<synchronous>, transform_indices = @transform_2, window_bounds = array<i64: 128, 3>}, {pipeline_mode = #tpu.pipeline_mode<synchronous>, transform_indices = @transform_3, window_bounds = array<i64: 128, 1>}, {pipeline_mode = #tpu.pipeline_mode<synchronous>, transform_indices = @transform_4, window_bounds = array<i64: 8, 128>}, {pipeline_mode = #tpu.pipeline_mode<synchronous>, transform_indices = @transform_5, window_bounds = array<i64: 8, 1>}, {transform_indices = @transform_6, window_bounds = array<i64: 2, 128>}]} {
    %c0 = arith.constant 0 : index
    %c0_0 = arith.constant 0 : index
    %0 = vector.load %arg1[%c0, %c0_0] : memref<3x128xf32, #tpu.memory_space<vmem>>, vector<3x128xf32>
    %c0_1 = arith.constant 0 : index
    %c0_2 = arith.constant 0 : index
    %1 = vector.load %arg3[%c0_1, %c0_2] : memref<128x3xf32, #tpu.memory_space<vmem>>, vector<128x3xf32>
    %c0_3 = arith.constant 0 : index
    %c0_4 = arith.constant 0 : index
    %2 = vector.load %arg4[%c0_3, %c0_4] : memref<128x1xf32, #tpu.memory_space<vmem>>, vector<128x1xf32>
    %c0_5 = arith.constant 0 : index
    %c0_6 = arith.constant 0 : index
    %3 = vector.load %arg5[%c0_5, %c0_6] : memref<8x128xf32, #tpu.memory_space<vmem>>, vector<8x128xf32>
    %c0_7 = arith.constant 0 : index
    %c0_8 = arith.constant 0 : index
    %4 = vector.load %arg6[%c0_7, %c0_8] : memref<8x1xf32, #tpu.memory_space<vmem>>, vector<8x1xf32>
    %5 = vector.extract_strided_slice %1 {offsets = [0, 0], sizes = [128, 1], strides = [1, 1]} : vector<128x3xf32> to vector<128x1xf32>
    %6 = vector.extract_strided_slice %0 {offsets = [0, 0], sizes = [1, 128], strides = [1, 1]} : vector<3x128xf32> to vector<1x128xf32>
    %7 = vector.broadcast %5 : vector<128x1xf32> to vector<128x128xf32>
    %8 = vector.broadcast %6 : vector<1x128xf32> to vector<128x128xf32>
    %9 = arith.mulf %7, %8 : vector<128x128xf32>
    %10 = vector.extract_strided_slice %1 {offsets = [0, 1], sizes = [128, 1], strides = [1, 1]} : vector<128x3xf32> to vector<128x1xf32>
    %11 = vector.extract_strided_slice %0 {offsets = [1, 0], sizes = [1, 128], strides = [1, 1]} : vector<3x128xf32> to vector<1x128xf32>
    %12 = vector.broadcast %10 : vector<128x1xf32> to vector<128x128xf32>
    %13 = vector.broadcast %11 : vector<1x128xf32> to vector<128x128xf32>
    %14 = arith.mulf %12, %13 : vector<128x128xf32>
    %15 = arith.addf %9, %14 : vector<128x128xf32>
    %16 = vector.extract_strided_slice %1 {offsets = [0, 2], sizes = [128, 1], strides = [1, 1]} : vector<128x3xf32> to vector<128x1xf32>
    %17 = vector.extract_strided_slice %0 {offsets = [2, 0], sizes = [1, 128], strides = [1, 1]} : vector<3x128xf32> to vector<1x128xf32>
    %18 = vector.broadcast %16 : vector<128x1xf32> to vector<128x128xf32>
    %19 = vector.broadcast %17 : vector<1x128xf32> to vector<128x128xf32>
    %20 = arith.mulf %18, %19 : vector<128x128xf32>
    %21 = arith.addf %15, %20 : vector<128x128xf32>
    %22 = vector.broadcast %2 : vector<128x1xf32> to vector<128x128xf32>
    %23 = arith.addf %21, %22 : vector<128x128xf32>
    %cst = arith.constant 0.000000e+00 : f32
    %24 = vector.broadcast %cst : f32 to vector<128x128xf32>
    %25 = arith.maximumf %23, %24 : vector<128x128xf32>
    %cst_9 = arith.constant dense<0.000000e+00> : vector<8x128xf32>
    %26 = tpu.matmul %3, %25, %cst_9 {dimension_numbers = #tpu.dot_dimension_numbers<[1], [0], [0], [1], [0, 0, 1, 1], [], []>} : vector<8x128xf32>, vector<128x128xf32>, vector<8x128xf32> -> vector<8x128xf32>
    %27 = vector.broadcast %4 : vector<8x1xf32> to vector<8x128xf32>
    %28 = arith.addf %26, %27 : vector<8x128xf32>
    %29 = vector.extract_strided_slice %28 {offsets = [0, 0], sizes = [1, 128], strides = [1, 1]} : vector<8x128xf32> to vector<1x128xf32>
    %30 = vector.extract_strided_slice %28 {offsets = [1, 0], sizes = [1, 128], strides = [1, 1]} : vector<8x128xf32> to vector<1x128xf32>
    %cst_10 = arith.constant 0.000000e+00 : f32
    %31 = vector.broadcast %cst_10 : f32 to vector<1x128xf32>
    %32 = arith.maximumf %30, %31 : vector<1x128xf32>
    %33 = vector.broadcast %cst_10 : f32 to vector<1x128xf32>
    %34 = arith.subf %30, %33 : vector<1x128xf32>
    %35 = arith.cmpf one, %34, %34 : vector<1x128xf32>
    %36 = vector.broadcast %cst_10 : f32 to vector<1x128xf32>
    %37 = arith.addf %30, %36 : vector<1x128xf32>
    %38 = math.absf %34 : vector<1x128xf32>
    %cst_11 = arith.constant 0.000000e+00 : f32
    %39 = vector.broadcast %cst_11 : f32 to vector<1x128xf32>
    %40 = arith.subf %39, %38 : vector<1x128xf32>
    %41 = math.exp %40 : vector<1x128xf32>
    %42 = math.log1p %41 : vector<1x128xf32>
    %43 = arith.addf %32, %42 : vector<1x128xf32>
    %44 = arith.select %35, %37, %43 : vector<1x128xi1>, vector<1x128xf32>
    %c0_12 = arith.constant 0 : index
    %c0_13 = arith.constant 0 : index
    %45 = vector.load %arg2[%c0_12, %c0_13] : memref<1x128xf32, #tpu.memory_space<vmem>>, vector<1x128xf32>
    %46 = arith.mulf %44, %45 : vector<1x128xf32>
    %47 = arith.addf %29, %46 : vector<1x128xf32>
    %cst_14 = arith.constant -5.000000e-01 : f32
    %48 = vector.broadcast %cst_14 : f32 to vector<1x128xf32>
    %49 = arith.mulf %48, %45 : vector<1x128xf32>
    %50 = arith.mulf %49, %45 : vector<1x128xf32>
    %51 = math.log %44 : vector<1x128xf32>
    %52 = arith.subf %50, %51 : vector<1x128xf32>
    %cst_15 = arith.constant 0.918938517 : f32
    %53 = vector.broadcast %cst_15 : f32 to vector<1x128xf32>
    %54 = arith.subf %52, %53 : vector<1x128xf32>
    %55 = math.tanh %47 : vector<1x128xf32>
    %56 = arith.mulf %55, %55 : vector<1x128xf32>
    %cst_16 = arith.constant 1.000000e+00 : f32
    %57 = vector.broadcast %cst_16 : f32 to vector<1x128xf32>
    %58 = arith.subf %57, %56 : vector<1x128xf32>
    %cst_17 = arith.constant 1.000000e-07 : f32
    %59 = vector.broadcast %cst_17 : f32 to vector<1x128xf32>
    %60 = arith.addf %58, %59 : vector<1x128xf32>
    %61 = math.log %60 : vector<1x128xf32>
    %62 = arith.subf %54, %61 : vector<1x128xf32>
    %c0_18 = arith.constant 0 : index
    %c0_19 = arith.constant 0 : index
    %63 = vector.load %arg7[%c0_18, %c0_19] : memref<2x128xf32, #tpu.memory_space<vmem>>, vector<1x128xf32>
    tpu.vector_store %arg7[%c0_18, %c0_19], %55 {strides = array<i32>} : memref<2x128xf32, #tpu.memory_space<vmem>>, vector<1x128xf32>,
    %c1 = arith.constant 1 : index
    %c0_20 = arith.constant 0 : index
    %64 = vector.load %arg7[%c1, %c0_20] : memref<2x128xf32, #tpu.memory_space<vmem>>, vector<1x128xf32>
    tpu.vector_store %arg7[%c1, %c0_20], %62 {strides = array<i32>} : memref<2x128xf32, #tpu.memory_space<vmem>>, vector<1x128xf32>,
    return
  }
  func.func @transform_0(%arg0: i32) -> (i32, i32) {
    %c0_i32 = arith.constant 0 : i32
    %c0_i32_0 = arith.constant 0 : i32
    return %c0_i32, %arg0 : i32, i32
  }
  func.func @transform_1(%arg0: i32) -> (i32, i32) {
    %c0_i32 = arith.constant 0 : i32
    %c0_i32_0 = arith.constant 0 : i32
    return %c0_i32, %arg0 : i32, i32
  }
  func.func @transform_2(%arg0: i32) -> (i32, i32) {
    %c0_i32 = arith.constant 0 : i32
    %c0_i32_0 = arith.constant 0 : i32
    %c0_i32_1 = arith.constant 0 : i32
    return %c0_i32, %c0_i32_0 : i32, i32
  }
  func.func @transform_3(%arg0: i32) -> (i32, i32) {
    %c0_i32 = arith.constant 0 : i32
    %c0_i32_0 = arith.constant 0 : i32
    %c0_i32_1 = arith.constant 0 : i32
    return %c0_i32, %c0_i32_0 : i32, i32
  }
  func.func @transform_4(%arg0: i32) -> (i32, i32) {
    %c0_i32 = arith.constant 0 : i32
    %c0_i32_0 = arith.constant 0 : i32
    %c0_i32_1 = arith.constant 0 : i32
    return %c0_i32, %c0_i32_0 : i32, i32
  }
  func.func @transform_5(%arg0: i32) -> (i32, i32) {
    %c0_i32 = arith.constant 0 : i32
    %c0_i32_0 = arith.constant 0 : i32
    %c0_i32_1 = arith.constant 0 : i32
    return %c0_i32, %c0_i32_0 : i32, i32
  }
  func.func @transform_6(%arg0: i32) -> (i32, i32) {
    %c0_i32 = arith.constant 0 : i32
    %c0_i32_0 = arith.constant 0 : i32
    return %c0_i32, %arg0 : i32, i32
  }
}

</mosaic_0001>

<llo_original>
// kernel: policy_forward.2
$region0: #{policy_forward.2}
  #allocation0 [shape = 'u32[]', space=smem, size = 0x4, offset = 0x4, fixed_abs, tag = 'smem constant byte address 0x4 - core index']
  #allocation1 [shape = 'u32[144,128]{1,0:T(1,128)}', space=vmem, size = 0x12000, scoped, tag = 'internal scratch']
  #allocation2 [shape = 'u32[2048]{0}', space=vmem, size = 0x2000, scoped, tag = 'scoped memory for policy_forward.2']
  #allocation3 [shape = 'u32[2048]{0}', space=vmem, size = 0x2000, scoped, tag = 'scoped memory for policy_forward.2']
  #allocation4 [shape = 'u32[2048]{0}', space=vmem, size = 0x2000, scoped, tag = 'scoped memory for policy_forward.2']
  #allocation5 [shape = 'u32[2048]{0}', space=vmem, size = 0x2000, scoped, tag = 'scoped memory for policy_forward.2']
  #allocation6 [shape = 'u32[2048]{0}', space=vmem, size = 0x2000, scoped, tag = 'scoped memory for policy_forward.2']
  #allocation7 [shape = 'u32[2048]{0}', space=vmem, size = 0x2000, scoped, tag = 'scoped memory for policy_forward.2']
  #allocation8 [shape = 'u32[2048]{0}', space=vmem, size = 0x2000, scoped, tag = 'scoped memory for policy_forward.2']
  #allocation9 [shape = 'u32[2048]{0}', space=vmem, size = 0x2000, scoped, tag = 'scoped memory for policy_forward.2']
  #allocation10 [shape = 'u32[2048]{0}', space=vmem, size = 0x2000, scoped, tag = 'scoped memory for policy_forward.2']
  #allocation11 [shape = 'u32[2048]{0}', space=vmem, size = 0x2000, scoped, tag = 'scoped memory for policy_forward.2']
  %s0 = inlined_call_operand.vmem [shape: f32[128,3], index: 0, kind: input, shape index: {}]
  %s1 = inlined_call_operand.vmem [shape: f32[128,1], index: 1, kind: input, shape index: {}]
  %s2 = inlined_call_operand.vmem [shape: f32[8,128], index: 2, kind: input, shape index: {}]
  %s3 = inlined_call_operand.vmem [shape: f32[8,1], index: 3, kind: input, shape index: {}]
  %s4 = inlined_call_operand.vmem [shape: f32[3,8], index: 4, kind: input, shape index: {}]
  %s5 = inlined_call_operand.<no memory space> [shape: f32[], index: 5, kind: input, shape index: {}]
  %s6 = inlined_call_operand.vmem [shape: f32[1,8], index: 6, kind: input, shape index: {}]
  %s7 = inlined_call_operand.vmem [shape: f32[2,128], index: 7, kind: output, shape index: {}]
  %s8 = sld [smem:[#allocation0]]
  $region34: #{policy_forward.2} parent=0
    _
  %s10 = ssub.s32 1, %s8
  %s11 = scalar_select 0, %s10, %s8
  %v12 = vstv %s5
  %v13 = vstv %s5
  $region1: #{policy_forward.2} parent=0
    #allocation12 [shape = 'u8[2048]{0}', space=vmem, size = 0x800, dematerialized = true, scoped, tag = 'FusionAdapter Buffer %fusion.1 = f32[3,128]{1,0:T(4,128)} fusion(%param_4.2, %param_5.2), kind=kLoop, calls=%fused_computation.1.clone, metadata={op_name="jit(policy_forward)/jit(_pad)/pad" stack_frame_id=8}']
    #allocation13 [shape = 'u8[512]{0}', space=vmem, size = 0x400, dematerialized = true, scoped, tag = 'FusionAdapter Buffer %fusion.2 = f32[1,128]{1,0:T(1,128)} fusion(%param_6.1, %param_5.2), kind=kLoop, calls=%fused_computation.2.clone, metadata={op_name="jit(policy_forward)/jit(_pad)/pad" stack_frame_id=10}']
    // Predicated region
    $region2: #{policy_forward.2} parent=1 // pred_check
      _
    $region3: #{policy_forward.2} parent=1 // pred_check_branch
      %15 = sbr.rel (0) target = $region5
    $region4: #{policy_forward.2} parent=1 // pred_region
      _
    $region5: #{policy_forward.2} parent=1 // pred_fallthru
      _
    // Predicated region
    $region6: #{policy_forward.2} parent=1 // pred_check
      _
    $region7: #{policy_forward.2} parent=1 // pred_check_branch
      %17 = sbr.rel (0) target = $region9
    $region8: #{policy_forward.2} parent=1 // pred_region
      _
    $region9: #{policy_forward.2} parent=1 // pred_fallthru
      _
    // Predicated region
    $region10: #{policy_forward.2} parent=1 // pred_check
      _
    $region11: #{policy_forward.2} parent=1 // pred_check_branch
      %19 = sbr.rel (0) target = $region13
    $region12: #{policy_forward.2} parent=1 // pred_region
      _
    $region13: #{policy_forward.2} parent=1 // pred_fallthru
      _
    // Predicated region
    $region14: #{policy_forward.2} parent=1 // pred_check
      _
    $region15: #{policy_forward.2} parent=1 // pred_check_branch
      %21 = sbr.rel (0) target = $region17
    $region16: #{policy_forward.2} parent=1 // pred_region
      _
    $region17: #{policy_forward.2} parent=1 // pred_fallthru
      _
    // Predicated region
    $region18: #{policy_forward.2} parent=1 // pred_check
      _
    $region19: #{policy_forward.2} parent=1 // pred_check_branch
      %23 = sbr.rel (0) target = $region21
    $region20: #{policy_forward.2} parent=1 // pred_region
      _
    $region21: #{policy_forward.2} parent=1 // pred_fallthru
      _
    // Predicated region
    $region22: #{policy_forward.2} parent=1 // pred_check
      _
    $region23: #{policy_forward.2} parent=1 // pred_check_branch
      %25 = sbr.rel (0) target = $region25
    $region24: #{policy_forward.2} parent=1 // pred_region
      _
    $region25: #{policy_forward.2} parent=1 // pred_fallthru
      _
    %v26 = vld [vmem:[%s4] sm:$0x7]
    %v27 = vlaneseq
    %v28 = vshrl.u32 %v27, 7
    %vm30 = vcmp.lt.s32.totalorder %v28, 3
    %v31 = vsel %vm30, %v26, %v12
    %v32 = vlaneseq
    %v33 = vand.u32 %v32, 127
    %vm35 = vcmp.lt.s32.totalorder %v33, 8
    %v36 = vsel %vm35, %v31, %v12
    %s38 = ssub.s32 16, 1
    %39 = vst [vmem:[#allocation12] sm:%s38] %v36
    %v40 = vld [vmem:[%s6] sm:$0x1]
    %v41 = vlaneseq
    %v42 = vshrl.u32 %v41, 7
    %vm44 = vcmp.lt.s32.totalorder %v42, 1
    %v45 = vsel %vm44, %v40, %v13
    %v46 = vlaneseq
    %v47 = vand.u32 %v46, 127
    %vm49 = vcmp.lt.s32.totalorder %v47, 8
    %v50 = vsel %vm49, %v45, %v13
    %s52 = ssub.s32 2, 1
    %53 = vst [vmem:[#allocation13] sm:%s52] %v50
    %v54 = vld [vmem:[#allocation12] sm:$0x7]
    %v55 = vld [vmem:[%s0] sm:$0xff]
    %v56 = vld [vmem:[%s0 + $0x8] sm:$0xff]
    %v57 = vld [vmem:[%s0 + $0x10] sm:$0xff]
    %v58 = vld [vmem:[%s0 + $0x18] sm:$0xff]
    %v59 = vld [vmem:[%s0 + $0x20] sm:$0xff]
    %v60 = vld [vmem:[%s0 + $0x28] sm:$0xff]
    %v61 = vld [vmem:[%s0 + $0x30] sm:$0xff]
    %v62 = vld [vmem:[%s0 + $0x38] sm:$0xff]
    %v63 = vld [vmem:[%s0 + $0x40] sm:$0xff]
    %v64 = vld [vmem:[%s0 + $0x48] sm:$0xff]
    %v65 = vld [vmem:[%s0 + $0x50] sm:$0xff]
    %v66 = vld [vmem:[%s0 + $0x58] sm:$0xff]
    %v67 = vld [vmem:[%s0 + $0x60] sm:$0xff]
    %v68 = vld [vmem:[%s0 + $0x68] sm:$0xff]
    %v69 = vld [vmem:[%s0 + $0x70] sm:$0xff]
    %v70 = vld [vmem:[%s0 + $0x78] sm:$0xff]
    %v71 = vld [vmem:[%s1] sm:$0xff]
    %v72 = vld [vmem:[%s1 + $0x8] sm:$0xff]
    %v73 = vld [vmem:[%s1 + $0x10] sm:$0xff]
    %v74 = vld [vmem:[%s1 + $0x18] sm:$0xff]
    %v75 = vld [vmem:[%s1 + $0x20] sm:$0xff]
    %v76 = vld [vmem:[%s1 + $0x28] sm:$0xff]
    %v77 = vld [vmem:[%s1 + $0x30] sm:$0xff]
    %v78 = vld [vmem:[%s1 + $0x38] sm:$0xff]
    %v79 = vld [vmem:[%s1 + $0x40] sm:$0xff]
    %v80 = vld [vmem:[%s1 + $0x48] sm:$0xff]
    %v81 = vld [vmem:[%s1 + $0x50] sm:$0xff]
    %v82 = vld [vmem:[%s1 + $0x58] sm:$0xff]
    %v83 = vld [vmem:[%s1 + $0x60] sm:$0xff]
    %v84 = vld [vmem:[%s1 + $0x68] sm:$0xff]
    %v85 = vld [vmem:[%s1 + $0x70] sm:$0xff]
    %v86 = vld [vmem:[%s1 + $0x78] sm:$0xff]
    %v87 = vld [vmem:[%s2] sm:$0xff]
    %v88 = vld [vmem:[%s3] sm:$0xff]
    %90 = vset.pattern.permute.xlu0 0
    %91 = vperm.xlu0 %90, %v55
    %v92 = vpop.permute.xlu0 %91
    %95 = vset.pattern.permute.xlu0 0
    %96 = vperm.xlu0 %95, %v56
    %v97 = vpop.permute.xlu0 %96
    %100 = vset.pattern.permute.xlu0 0
    %101 = vperm.xlu0 %100, %v57
    %v102 = vpop.permute.xlu0 %101
    %105 = vset.pattern.permute.xlu0 0
    %106 = vperm.xlu0 %105, %v58
    %v107 = vpop.permute.xlu0 %106
    %110 = vset.pattern.permute.xlu0 0
    %111 = vperm.xlu0 %110, %v59
    %v112 = vpop.permute.xlu0 %111
    %115 = vset.pattern.permute.xlu0 0
    %116 = vperm.xlu0 %115, %v60
    %v117 = vpop.permute.xlu0 %116
    %120 = vset.pattern.permute.xlu0 0
    %121 = vperm.xlu0 %120, %v61
    %v122 = vpop.permute.xlu0 %121
    %125 = vset.pattern.permute.xlu0 0
    %126 = vperm.xlu0 %125, %v62
    %v127 = vpop.permute.xlu0 %126
    %130 = vset.pattern.permute.xlu0 0
    %131 = vperm.xlu0 %130, %v63
    %v132 = vpop.permute.xlu0 %131
    %135 = vset.pattern.permute.xlu0 0
    %136 = vperm.xlu0 %135, %v64
    %v137 = vpop.permute.xlu0 %136
    %140 = vset.pattern.permute.xlu0 0
    %141 = vperm.xlu0 %140, %v65
    %v142 = vpop.permute.xlu0 %141
    %145 = vset.pattern.permute.xlu0 0
    %146 = vperm.xlu0 %145, %v66
    %v147 = vpop.permute.xlu0 %146
    %150 = vset.pattern.permute.xlu0 0
    %151 = vperm.xlu0 %150, %v67
    %v152 = vpop.permute.xlu0 %151
    %155 = vset.pattern.permute.xlu0 0
    %156 = vperm.xlu0 %155, %v68
    %v157 = vpop.permute.xlu0 %156
    %160 = vset.pattern.permute.xlu0 0
    %161 = vperm.xlu0 %160, %v69
    %v162 = vpop.permute.xlu0 %161
    %165 = vset.pattern.permute.xlu0 0
    %166 = vperm.xlu0 %165, %v70
    %v167 = vpop.permute.xlu0 %166
    %v169 = vlaneseq
    %v170 = vshrl.u32 %v169, 7
    %v171 = vsub.s32 0, %v170
    %v172 = vrot.slane %v54, %v171
    %v173 = vmul.f32 %v92, %v172
    %v174 = vmul.f32 %v97, %v172
    %v175 = vmul.f32 %v102, %v172
    %v176 = vmul.f32 %v107, %v172
    %v177 = vmul.f32 %v112, %v172
    %v178 = vmul.f32 %v117, %v172
    %v179 = vmul.f32 %v122, %v172
    %v180 = vmul.f32 %v127, %v172
    %v181 = vmul.f32 %v132, %v172
    %v182 = vmul.f32 %v137, %v172
    %v183 = vmul.f32 %v142, %v172
    %v184 = vmul.f32 %v147, %v172
    %v185 = vmul.f32 %v152, %v172
    %v186 = vmul.f32 %v157, %v172
    %v187 = vmul.f32 %v162, %v172
    %v188 = vmul.f32 %v167, %v172
    %189 = vset.pattern.permute.xlu0 1
    %190 = vperm.xlu0 %189, %v55
    %v191 = vpop.permute.xlu0 %190
    %193 = vset.pattern.permute.xlu0 1
    %194 = vperm.xlu0 %193, %v56
    %v195 = vpop.permute.xlu0 %194
    %197 = vset.pattern.permute.xlu0 1
    %198 = vperm.xlu0 %197, %v57
    %v199 = vpop.permute.xlu0 %198
    %201 = vset.pattern.permute.xlu0 1
    %202 = vperm.xlu0 %201, %v58
    %v203 = vpop.permute.xlu0 %202
    %205 = vset.pattern.permute.xlu0 1
    %206 = vperm.xlu0 %205, %v59
    %v207 = vpop.permute.xlu0 %206
    %209 = vset.pattern.permute.xlu0 1
    %210 = vperm.xlu0 %209, %v60
    %v211 = vpop.permute.xlu0 %210
    %213 = vset.pattern.permute.xlu0 1
    %214 = vperm.xlu0 %213, %v61
    %v215 = vpop.permute.xlu0 %214
    %217 = vset.pattern.permute.xlu0 1
    %218 = vperm.xlu0 %217, %v62
    %v219 = vpop.permute.xlu0 %218
    %221 = vset.pattern.permute.xlu0 1
    %222 = vperm.xlu0 %221, %v63
    %v223 = vpop.permute.xlu0 %222
    %225 = vset.pattern.permute.xlu0 1
    %226 = vperm.xlu0 %225, %v64
    %v227 = vpop.permute.xlu0 %226
    %229 = vset.pattern.permute.xlu0 1
    %230 = vperm.xlu0 %229, %v65
    %v231 = vpop.permute.xlu0 %230
    %233 = vset.pattern.permute.xlu0 1
    %234 = vperm.xlu0 %233, %v66
    %v235 = vpop.permute.xlu0 %234
    %237 = vset.pattern.permute.xlu0 1
    %238 = vperm.xlu0 %237, %v67
    %v239 = vpop.permute.xlu0 %238
    %241 = vset.pattern.permute.xlu0 1
    %242 = vperm.xlu0 %241, %v68
    %v243 = vpop.permute.xlu0 %242
    %245 = vset.pattern.permute.xlu0 1
    %246 = vperm.xlu0 %245, %v69
    %v247 = vpop.permute.xlu0 %246
    %249 = vset.pattern.permute.xlu0 1
    %250 = vperm.xlu0 %249, %v70
    %v251 = vpop.permute.xlu0 %250
    %v253 = vlaneseq
    %v254 = vshrl.u32 %v253, 7
    %v255 = vsub.s32 1, %v254
    %v256 = vrot.slane %v54, %v255
    %v257 = vmul.f32 %v191, %v256
    %v258 = vmul.f32 %v195, %v256
    %v259 = vmul.f32 %v199, %v256
    %v260 = vmul.f32 %v203, %v256
    %v261 = vmul.f32 %v207, %v256
    %v262 = vmul.f32 %v211, %v256
    %v263 = vmul.f32 %v215, %v256
    %v264 = vmul.f32 %v219, %v256
    %v265 = vmul.f32 %v223, %v256
    %v266 = vmul.f32 %v227, %v256
    %v267 = vmul.f32 %v231, %v256
    %v268 = vmul.f32 %v235, %v256
    %v269 = vmul.f32 %v239, %v256
    %v270 = vmul.f32 %v243, %v256
    %v271 = vmul.f32 %v247, %v256
    %v272 = vmul.f32 %v251, %v256
    %v273 = vadd.f32 %v173, %v257
    %v274 = vadd.f32 %v174, %v258
    %v275 = vadd.f32 %v175, %v259
    %v276 = vadd.f32 %v176, %v260
    %v277 = vadd.f32 %v177, %v261
    %v278 = vadd.f32 %v178, %v262
    %v279 = vadd.f32 %v179, %v263
    %v280 = vadd.f32 %v180, %v264
    %v281 = vadd.f32 %v181, %v265
    %v282 = vadd.f32 %v182, %v266
    %v283 = vadd.f32 %v183, %v267
    %v284 = vadd.f32 %v184, %v268
    %v285 = vadd.f32 %v185, %v269
    %v286 = vadd.f32 %v186, %v270
    %v287 = vadd.f32 %v187, %v271
    %v288 = vadd.f32 %v188, %v272
    %289 = vset.pattern.permute.xlu0 2
    %290 = vperm.xlu0 %289, %v55
    %v291 = vpop.permute.xlu0 %290
    %293 = vset.pattern.permute.xlu0 2
    %294 = vperm.xlu0 %293, %v56
    %v295 = vpop.permute.xlu0 %294
    %297 = vset.pattern.permute.xlu0 2
    %298 = vperm.xlu0 %297, %v57
    %v299 = vpop.permute.xlu0 %298
    %301 = vset.pattern.permute.xlu0 2
    %302 = vperm.xlu0 %301, %v58
    %v303 = vpop.permute.xlu0 %302
    %305 = vset.pattern.permute.xlu0 2
    %306 = vperm.xlu0 %305, %v59
    %v307 = vpop.permute.xlu0 %306
    %309 = vset.pattern.permute.xlu0 2
    %310 = vperm.xlu0 %309, %v60
    %v311 = vpop.permute.xlu0 %310
    %313 = vset.pattern.permute.xlu0 2
    %314 = vperm.xlu0 %313, %v61
    %v315 = vpop.permute.xlu0 %314
    %317 = vset.pattern.permute.xlu0 2
    %318 = vperm.xlu0 %317, %v62
    %v319 = vpop.permute.xlu0 %318
    %321 = vset.pattern.permute.xlu0 2
    %322 = vperm.xlu0 %321, %v63
    %v323 = vpop.permute.xlu0 %322
    %325 = vset.pattern.permute.xlu0 2
    %326 = vperm.xlu0 %325, %v64
    %v327 = vpop.permute.xlu0 %326
    %329 = vset.pattern.permute.xlu0 2
    %330 = vperm.xlu0 %329, %v65
    %v331 = vpop.permute.xlu0 %330
    %333 = vset.pattern.permute.xlu0 2
    %334 = vperm.xlu0 %333, %v66
    %v335 = vpop.permute.xlu0 %334
    %337 = vset.pattern.permute.xlu0 2
    %338 = vperm.xlu0 %337, %v67
    %v339 = vpop.permute.xlu0 %338
    %341 = vset.pattern.permute.xlu0 2
    %342 = vperm.xlu0 %341, %v68
    %v343 = vpop.permute.xlu0 %342
    %345 = vset.pattern.permute.xlu0 2
    %346 = vperm.xlu0 %345, %v69
    %v347 = vpop.permute.xlu0 %346
    %349 = vset.pattern.permute.xlu0 2
    %350 = vperm.xlu0 %349, %v70
    %v351 = vpop.permute.xlu0 %350
    %v353 = vlaneseq
    %v354 = vshrl.u32 %v353, 7
    %v355 = vsub.s32 2, %v354
    %v356 = vrot.slane %v54, %v355
    %v357 = vmul.f32 %v291, %v356
    %v358 = vmul.f32 %v295, %v356
    %v359 = vmul.f32 %v299, %v356
    %v360 = vmul.f32 %v303, %v356
    %v361 = vmul.f32 %v307, %v356
    %v362 = vmul.f32 %v311, %v356
    %v363 = vmul.f32 %v315, %v356
    %v364 = vmul.f32 %v319, %v356
    %v365 = vmul.f32 %v323, %v356
    %v366 = vmul.f32 %v327, %v356
    %v367 = vmul.f32 %v331, %v356
    %v368 = vmul.f32 %v335, %v356
    %v369 = vmul.f32 %v339, %v356
    %v370 = vmul.f32 %v343, %v356
    %v371 = vmul.f32 %v347, %v356
    %v372 = vmul.f32 %v351, %v356
    %v373 = vadd.f32 %v273, %v357
    %v374 = vadd.f32 %v274, %v358
    %v375 = vadd.f32 %v275, %v359
    %v376 = vadd.f32 %v276, %v360
    %v377 = vadd.f32 %v277, %v361
    %v378 = vadd.f32 %v278, %v362
    %v379 = vadd.f32 %v279, %v363
    %v380 = vadd.f32 %v280, %v364
    %v381 = vadd.f32 %v281, %v365
    %v382 = vadd.f32 %v282, %v366
    %v383 = vadd.f32 %v283, %v367
    %v384 = vadd.f32 %v284, %v368
    %v385 = vadd.f32 %v285, %v369
    %v386 = vadd.f32 %v286, %v370
    %v387 = vadd.f32 %v287, %v371
    %v388 = vadd.f32 %v288, %v372
    %390 = vset.pattern.permute.xlu0 0
    %391 = vperm.xlu0 %390, %v71
    %v392 = vpop.permute.xlu0 %391
    %395 = vset.pattern.permute.xlu0 0
    %396 = vperm.xlu0 %395, %v72
    %v397 = vpop.permute.xlu0 %396
    %400 = vset.pattern.permute.xlu0 0
    %401 = vperm.xlu0 %400, %v73
    %v402 = vpop.permute.xlu0 %401
    %405 = vset.pattern.permute.xlu0 0
    %406 = vperm.xlu0 %405, %v74
    %v407 = vpop.permute.xlu0 %406
    %410 = vset.pattern.permute.xlu0 0
    %411 = vperm.xlu0 %410, %v75
    %v412 = vpop.permute.xlu0 %411
    %415 = vset.pattern.permute.xlu0 0
    %416 = vperm.xlu0 %415, %v76
    %v417 = vpop.permute.xlu0 %416
    %420 = vset.pattern.permute.xlu0 0
    %421 = vperm.xlu0 %420, %v77
    %v422 = vpop.permute.xlu0 %421
    %425 = vset.pattern.permute.xlu0 0
    %426 = vperm.xlu0 %425, %v78
    %v427 = vpop.permute.xlu0 %426
    %430 = vset.pattern.permute.xlu0 0
    %431 = vperm.xlu0 %430, %v79
    %v432 = vpop.permute.xlu0 %431
    %435 = vset.pattern.permute.xlu0 0
    %436 = vperm.xlu0 %435, %v80
    %v437 = vpop.permute.xlu0 %436
    %440 = vset.pattern.permute.xlu0 0
    %441 = vperm.xlu0 %440, %v81
    %v442 = vpop.permute.xlu0 %441
    %445 = vset.pattern.permute.xlu0 0
    %446 = vperm.xlu0 %445, %v82
    %v447 = vpop.permute.xlu0 %446
    %450 = vset.pattern.permute.xlu0 0
    %451 = vperm.xlu0 %450, %v83
    %v452 = vpop.permute.xlu0 %451
    %455 = vset.pattern.permute.xlu0 0
    %456 = vperm.xlu0 %455, %v84
    %v457 = vpop.permute.xlu0 %456
    %460 = vset.pattern.permute.xlu0 0
    %461 = vperm.xlu0 %460, %v85
    %v462 = vpop.permute.xlu0 %461
    %465 = vset.pattern.permute.xlu0 0
    %466 = vperm.xlu0 %465, %v86
    %v467 = vpop.permute.xlu0 %466
    %v469 = vadd.f32 %v373, %v392
    %v470 = vadd.f32 %v374, %v397
    %v471 = vadd.f32 %v375, %v402
    %v472 = vadd.f32 %v376, %v407
    %v473 = vadd.f32 %v377, %v412
    %v474 = vadd.f32 %v378, %v417
    %v475 = vadd.f32 %v379, %v422
    %v476 = vadd.f32 %v380, %v427
    %v477 = vadd.f32 %v381, %v432
    %v478 = vadd.f32 %v382, %v437
    %v479 = vadd.f32 %v383, %v442
    %v480 = vadd.f32 %v384, %v447
    %v481 = vadd.f32 %v385, %v452
    %v482 = vadd.f32 %v386, %v457
    %v483 = vadd.f32 %v387, %v462
    %v484 = vadd.f32 %v388, %v467
    %v485 = vmax.f32 %v469, 0.0
    %v486 = vmax.f32 %v470, 0.0
    %v487 = vmax.f32 %v471, 0.0
    %v488 = vmax.f32 %v472, 0.0
    %v489 = vmax.f32 %v473, 0.0
    %v490 = vmax.f32 %v474, 0.0
    %v491 = vmax.f32 %v475, 0.0
    %v492 = vmax.f32 %v476, 0.0
    %v493 = vmax.f32 %v477, 0.0
    %v494 = vmax.f32 %v478, 0.0
    %v495 = vmax.f32 %v479, 0.0
    %v496 = vmax.f32 %v480, 0.0
    %v497 = vmax.f32 %v481, 0.0
    %v498 = vmax.f32 %v482, 0.0
    %v499 = vmax.f32 %v483, 0.0
    %v500 = vmax.f32 %v484, 0.0
    %502 = vset.pattern.permute.xlu0 0
    %503 = vperm.xlu0 %502, %v88
    %v504 = vpop.permute.xlu0 %503
    %506 = vmatprep.subr.mxu0 0.0
    %507 = vmatpush1.msra.mxu0 %v500
    %508 = vmatprep.subr.mxu0 0.0
    %509 = vmatpush1.msra.mxu0 %v499
    %510 = vmatprep.subr.mxu0 0.0
    %511 = vmatpush1.msra.mxu0 %v498
    %512 = vmatprep.subr.mxu0 0.0
    %513 = vmatpush1.msra.mxu0 %v497
    %514 = vmatprep.subr.mxu0 0.0
    %515 = vmatpush1.msra.mxu0 %v496
    %516 = vmatprep.subr.mxu0 0.0
    %517 = vmatpush1.msra.mxu0 %v495
    %518 = vmatprep.subr.mxu0 0.0
    %519 = vmatpush1.msra.mxu0 %v494
    %520 = vmatprep.subr.mxu0 0.0
    %521 = vmatpush1.msra.mxu0 %v493
    %522 = vmatprep.subr.mxu0 0.0
    %523 = vmatpush1.msra.mxu0 %v492
    %524 = vmatprep.subr.mxu0 0.0
    %525 = vmatpush1.msra.mxu0 %v491
    %526 = vmatprep.subr.mxu0 0.0
    %527 = vmatpush1.msra.mxu0 %v490
    %528 = vmatprep.subr.mxu0 0.0
    %529 = vmatpush1.msra.mxu0 %v489
    %530 = vmatprep.subr.mxu0 0.0
    %531 = vmatpush1.msra.mxu0 %v488
    %532 = vmatprep.subr.mxu0 0.0
    %533 = vmatpush1.msra.mxu0 %v487
    %534 = vmatprep.subr.mxu0 0.0
    %535 = vmatpush1.msra.mxu0 %v486
    %536 = vmatprep.subr.mxu0 0.0
    %537 = vmatpush1.msra.mxu0 %v485
    %538 = vmatprep.subr.mxu0 0.0
    %539 = vmatpush2.msra.mxu0 0.0
    %540 = vmatprep.subr.mxu0 0.0
    %541 = vmatpush2.msra.mxu0 0.0
    %542 = vmatprep.subr.mxu0 0.0
    %543 = vmatpush2.msra.mxu0 0.0
    %544 = vmatprep.subr.mxu0 0.0
    %545 = vmatpush2.msra.mxu0 0.0
    %546 = vmatprep.subr.mxu0 0.0
    %547 = vmatpush2.msra.mxu0 0.0
    %548 = vmatprep.subr.mxu0 0.0
    %549 = vmatpush2.msra.mxu0 0.0
    %550 = vmatprep.subr.mxu0 0.0
    %551 = vmatpush2.msra.mxu0 0.0
    %552 = vmatprep.subr.mxu0 0.0
    %553 = vmatpush2.msra.mxu0 0.0
    %554 = vmatprep.subr.mxu0 0.0
    %555 = vmatpush2.msra.mxu0 0.0
    %556 = vmatprep.subr.mxu0 0.0
    %557 = vmatpush2.msra.mxu0 0.0
    %558 = vmatprep.subr.mxu0 0.0
    %559 = vmatpush2.msra.mxu0 0.0
    %560 = vmatprep.subr.mxu0 0.0
    %561 = vmatpush2.msra.mxu0 0.0
    %562 = vmatprep.subr.mxu0 0.0
    %563 = vmatpush2.msra.mxu0 0.0
    %564 = vmatprep.subr.mxu0 0.0
    %565 = vmatpush2.msra.mxu0 0.0
    %566 = vmatprep.subr.mxu0 0.0
    %567 = vmatpush2.msra.mxu0 0.0
    %568 = vmatprep.subr.mxu0 0.0
    %569 = vmatpush2.msra.mxu0 0.0
    %570 = vmatprep.mubr.f32.mxu0 0.0
    %571 = vmatmul.mubr.f32.gmra.mxu0 %v87
    %v572 = vpop.f32.mrf.mxu0
    %v573 = vadd.f32 %v504, %v572
    %v574 = vpop.f32.mrf.mxu0
    %575 = vdwg.mxu0
    %v576 = vmax.f32 %v573, 0.0
    %vm577 = vcmp.ne.f32.partialorder %v573, %v573
    %v578 = vadd.f32 %v573, 0.0
    %v579 = vand.u32 2147483647, %v573
    %v580 = vsub.f32 0.0, %v579
    %v581 = vmul.f32 %v580, 1.442695
    %v582 = vpow.pop %v581
    %v583 = vadd.f32 %v582, 1.0
    %v584 = vlog2.pop %v583
    %v585 = vmul.f32 %v584, 0.6931472
    %v586 = vmul.f32 -0.5, %v582
    %v587 = vadd.f32 %v586, 1.0
    %v588 = vmul.f32 %v587, %v582
    %v589 = vand.u32 2147483647, %v582
    %vm590 = vcmp.lt.f32.partialorder %v589, 0.0004427343
    %v591 = vsel %vm590, %v588, %v585
    %v592 = vadd.f32 %v576, %v591
    %v593 = vsel %vm577, %v578, %v592
    %v594 = vld [vmem:[#allocation13] sm:$0x1]
    %v596 = vlaneseq
    %v597 = vshrl.u32 %v596, 7
    %v598 = vsub.s32 0, %v597
    %v599 = vrot.slane %v594, %v598
    %v601 = vmul.f32 %v593, %v599
    %v603 = vrot.slane %v601, 1
    %v605 = vadd.f32 %v573, %v603
    %v606 = vmul.f32 %v594, -0.5
    %v607 = vmul.f32 %v606, %v594
    %v608 = vlog2.pop %v593
    %v609 = vmul.f32 %v608, 0.6931472
    %v612 = vunpack.c.l.s4 1966171168
    %v613 = vunpack.c.0.s8 %v612
    %v614 = vlaneseq
    %v615 = vshrl.u32 %v614, 7
    %v616 = vsub.s32 %v613, %v615
    %v617 = vrot.slane %v609, %v616
    %v618 = vcombine.high %v617, %v617
    %v620 = vunpack.c.l.s4 1966171168
    %v621 = vunpack.c.0.s8 %v620
    %v622 = vlaneseq
    %v623 = vshrl.u32 %v622, 7
    %v624 = vsub.s32 %v621, %v623
    %v625 = vrot.slane %v618, %v624
    %v627 = vsub.f32 %v607, %v625
    %v628 = vsub.f32 %v627, 0.9189385
    %v629 = vtanh.pop %v605
    %v630 = vmul.f32 %v629, %v629
    %v631 = vsub.f32 1.0, %v630
    %v632 = vadd.f32 %v631, 1e-07
    %v633 = vlog2.pop %v632
    %v634 = vmul.f32 %v633, 0.6931472
    %v635 = vsub.f32 %v628, %v634
    %636 = vst [vmem:[%s7] sm:$0x1] %v629
    %637 = vst [vmem:[%s7 + $0x1] sm:$0x1] %v635
    // Predicated region
    $region26: #{policy_forward.2} parent=1 // pred_check
      _
    $region27: #{policy_forward.2} parent=1 // pred_check_branch
      %639 = sbr.rel (0) target = $region29
    $region28: #{policy_forward.2} parent=1 // pred_region
      _
    $region29: #{policy_forward.2} parent=1 // pred_fallthru
      _
    // Predicated region
    $region30: #{policy_forward.2} parent=1 // pred_check
      _
    $region31: #{policy_forward.2} parent=1 // pred_check_branch
      %641 = sbr.rel (0) target = $region33
    $region32: #{policy_forward.2} parent=1 // pred_region
      _
    $region33: #{policy_forward.2} parent=1 // pred_fallthru
      _

</llo_original>
